<compile_context>
chip_gen: v6e
topology: v6e:2x2x1
jax: 0.10.0
libtpu: 0.0.40
codegen_flags: <defaults>
</compile_context>

<pallas_src>
import jax
import jax.numpy as jnp
from jax.experimental import pallas as pl
from jax.experimental.pallas import tpu as pltpu

N, H, W, C = 2, 16, 16, 8          # batch, spatial, channels (inplanes == planes)
NH, WC = N * H, W * C              # lane-dense layout: (N*H, W*C) = (32, 128)
EPS = 1e-5

assert WC == 128, "kernel assumes a lane-dense W*C == 128 layout"


# ---------------------------------------------------------------------------
# kernel
# ---------------------------------------------------------------------------
def basic_block_kernel(x_ref, wb1_ref, wb2_ref, b1_ref, b2_ref, o_ref):
    """All refs live in VMEM.

    x_ref  : (NH, WC) f32        lane-dense input rows (one row = one (n, h) line)
    wb*_ref: (3*WC, WC) bf16     fused banded conv weights (BN scale folded);
                                 row block dh*WC.. holds the dh-th vertical tap
    b*_ref : (1, WC) f32         folded BN bias, tiled across W
    o_ref  : (NH, WC) f32        output rows
    """
    x = x_ref[...]

    # Boundary masks for the vertical taps (computed once, reused by both convs;
    # JAX does not CSE broadcasts, so hoist explicitly).
    h_idx = jax.lax.broadcasted_iota(jnp.int32, (NH, WC), 0) % H
    top = h_idx == 0          # rows with h == 0     -> "row above" is padding
    bot = h_idx == H - 1      # rows with h == H - 1 -> "row below" is padding

    def conv3x3(a, wb_ref):
        # Vertical taps via sublane rotation (XLU) + zero masks (VPU); the
        # cross-batch wraparound rows are exactly the masked boundary rows.
        a_up = jnp.where(top, 0.0, pltpu.roll(a, shift=1, axis=0))       # a[i-1]
        a_dn = jnp.where(bot, 0.0, pltpu.roll(a, shift=NH - 1, axis=0))  # a[i+1]
        # Single fused contraction: (NH, 3*WC) @ (3*WC, WC), K = 384.
        a_cat = jnp.concatenate([a_up, a, a_dn], axis=1).astype(jnp.bfloat16)
        return jnp.dot(a_cat, wb_ref[...], preferred_element_type=jnp.float32)

    out1 = jnp.maximum(conv3x3(x, wb1_ref) + b1_ref[...], 0.0)   # conv1+bn1+relu
    out2 = conv3x3(out1, wb2_ref) + b2_ref[...]                  # conv2+bn2
    o_ref[...] = jnp.maximum(out2 + x, 0.0)                      # +residual, relu


# ---------------------------------------------------------------------------
# one-time parameter folding (init-time work, not per-call)
# ---------------------------------------------------------------------------
def fold_bn(gamma, beta, mean, var):
    scale = gamma / jnp.sqrt(var + EPS)
    bias = beta - mean * scale
    return scale.astype(jnp.float32), bias.astype(jnp.float32)


def make_band_weight(w_oihw, out_scale):
    """OIHW 3x3 weight + per-output-channel BN scale -> fused (3*WC, WC) bf16 band."""
    w = jnp.transpose(w_oihw, (2, 3, 1, 0)).astype(jnp.float32)   # (dh, dw, ci, co)
    w = w * out_scale[None, None, None, :]                        # fold BN scale
    band = jnp.zeros((3, WC, WC), jnp.float32)
    for dw in range(3):
        for wo in range(W):
            wi = wo + dw - 1
            if 0 <= wi < W:                 # missing blocks == W zero-padding
                band = band.at[:, wi * C:(wi + 1) * C,
                               wo * C:(wo + 1) * C].set(w[:, dw])
    # Stack the three vertical taps along K: row index = dh*WC + wi*C + ci,
    # matching the in-kernel concat order [a_up (dh=0), a (dh=1), a_dn (dh=2)].
    return band.reshape(3 * WC, WC).astype(jnp.bfloat16)


def prepare_params(w1_oihw, w2_oihw, bn1_params, bn2_params):
    s1, b1 = fold_bn(*bn1_params)
    s2, b2 = fold_bn(*bn2_params)
    return (make_band_weight(w1_oihw, s1), make_band_weight(w2_oihw, s2),
            jnp.tile(b1, W).reshape(1, WC), jnp.tile(b2, W).reshape(1, WC))


# ---------------------------------------------------------------------------
# forward
# ---------------------------------------------------------------------------
_COST = pl.CostEstimate(
    flops=2 * (2 * NH * (3 * WC) * WC),                 # two K=384 contractions
    transcendentals=0,
    bytes_accessed=(2 * NH * WC * 4                     # x in + out (f32)
                    + 2 * (3 * WC) * WC * 2             # two bf16 bands
                    + 2 * WC * 4),                      # two f32 biases
)


@jax.jit
def basic_block_forward_rows(x_rows, wb1, wb2, b1, b2):
    """Chainable entry point: lane-dense (NH, WC) rows in, same layout out."""
    vmem = pl.BlockSpec(memory_space=pltpu.MemorySpace.VMEM)
    return pl.pallas_call(
        basic_block_kernel,
        out_shape=jax.ShapeDtypeStruct((NH, WC), jnp.float32),
        in_specs=[vmem] * 5,
        out_specs=vmem,
        cost_estimate=_COST,
    )(x_rows, wb1, wb2, b1, b2)


@jax.jit
def basic_block_forward_nchw(x_nchw, wb1, wb2, b1, b2):
    """NCHW wrapper matching the PyTorch interface (boundary relayout only)."""
    x_rows = jnp.transpose(x_nchw, (0, 2, 3, 1)).astype(jnp.float32).reshape(NH, WC)
    out_rows = basic_block_forward_rows(x_rows, wb1, wb2, b1, b2)
    return jnp.transpose(out_rows.reshape(N, H, W, C), (0, 3, 1, 2))


# ---------------------------------------------------------------------------
# pure-JAX references
# ---------------------------------------------------------------------------
def reference_forward(x_nchw, w1_oihw, w2_oihw, bn1_params, bn2_params, mxu_dtype):
    """mxu_dtype=bf16 mirrors the kernel's mixed-precision policy (bf16 conv
    operands, f32 accumulation); mxu_dtype=f32 is exact eval-mode semantics."""
    x = jnp.transpose(x_nchw, (0, 2, 3, 1)).astype(jnp.float32)
    s1, b1 = fold_bn(*bn1_params)
    s2, b2 = fold_bn(*bn2_params)
    w1 = (jnp.transpose(w1_oihw, (2, 3, 1, 0)).astype(jnp.float32)
          * s1[None, None, None, :]).astype(mxu_dtype)
    w2 = (jnp.transpose(w2_oihw, (2, 3, 1, 0)).astype(jnp.float32)
          * s2[None, None, None, :]).astype(mxu_dtype)

    def conv(a, w):
        return jax.lax.conv_general_dilated(
            a.astype(mxu_dtype), w, (1, 1), "SAME",
            dimension_numbers=("NHWC", "HWIO", "NHWC"),
            preferred_element_type=jnp.float32)

    o = jnp.maximum(conv(x, w1) + b1[None, None, None, :], 0.0)
    o = conv(o, w2) + b2[None, None, None, :]
    o = jnp.maximum(o + x, 0.0)
    return jnp.transpose(o, (0, 3, 1, 2))


if __name__ == "__main__":
    key = jax.random.PRNGKey(0)
    ks = jax.random.split(key, 11)

    # deterministic synthetic parameters (shapes from BasicBlock.__init__)
    x = jax.random.normal(ks[0], (N, C, H, W), jnp.float32)
    w1 = 0.1 * jax.random.normal(ks[1], (C, C, 3, 3), jnp.float32)   # conv1.weight
    w2 = 0.1 * jax.random.normal(ks[2], (C, C, 3, 3), jnp.float32)   # conv2.weight
    bn1 = (1.0 + 0.1 * jax.random.normal(ks[3], (C,), jnp.float32),  # gamma
           0.1 * jax.random.normal(ks[4], (C,), jnp.float32),        # beta
           0.05 * jax.random.normal(ks[5], (C,), jnp.float32),       # running_mean
           1.0 + 0.1 * jnp.abs(jax.random.normal(ks[6], (C,), jnp.float32)))
    bn2 = (1.0 + 0.1 * jax.random.normal(ks[7], (C,), jnp.float32),
           0.1 * jax.random.normal(ks[8], (C,), jnp.float32),
           0.05 * jax.random.normal(ks[9], (C,), jnp.float32),
           1.0 + 0.1 * jnp.abs(jax.random.normal(ks[10], (C,), jnp.float32)))

    params = prepare_params(w1, w2, bn1, bn2)
    out = jax.block_until_ready(basic_block_forward_nchw(x, *params))
    assert out.shape == (N, C, H, W)

    # (1) tight check vs a reference using the same mixed-precision policy
    #     (bf16 MXU operands, f32 accumulation) -- isolates layout/roll/band bugs.
    ref_mixed = reference_forward(x, w1, w2, bn1, bn2, jnp.bfloat16)
    assert jnp.allclose(out, ref_mixed, rtol=5e-3, atol=5e-3), \
        "mismatch vs mixed-precision reference"

    # (2) fidelity check vs exact f32 module semantics (bf16 operand rounding only).
    ref_f32 = reference_forward(x, w1, w2, bn1, bn2, jnp.float32)
    assert jnp.allclose(out, ref_f32, rtol=5e-2, atol=5e-2), \
        "mismatch vs f32 reference"

    print("KERNEL_OK")
</pallas_src>

<mosaic_0001>
module attributes {stable_mosaic.version = 11 : i64} {
  func.func @basic_block_kernel(%arg0: memref<32x128xf32, #tpu.memory_space<vmem>>, %arg1: memref<384x128xbf16, #tpu.memory_space<vmem>>, %arg2: memref<384x128xbf16, #tpu.memory_space<vmem>>, %arg3: memref<1x128xf32, #tpu.memory_space<vmem>>, %arg4: memref<1x128xf32, #tpu.memory_space<vmem>>, %arg5: memref<32x128xf32, #tpu.memory_space<vmem>>) attributes {dimension_semantics = [], scalar_prefetch = 0 : i64, scratch_operands = 0 : i64, tpu.core_type = #tpu.core_type<tc>} {
    %c0 = arith.constant 0 : index
    %c0_0 = arith.constant 0 : index
    %0 = vector.load %arg0[%c0, %c0_0] : memref<32x128xf32, #tpu.memory_space<vmem>>, vector<32x128xf32>
    %1 = tpu.iota {dimensions = array<i32: 0>} : vector<32x128xi32>
    %c16_i32 = arith.constant 16 : i32
    %c0_i32 = arith.constant 0 : i32
    %2 = arith.cmpi eq, %c16_i32, %c0_i32 : i32
    %c1_i32 = arith.constant 1 : i32
    %3 = arith.select %2, %c1_i32, %c16_i32 : i32
    %4 = vector.broadcast %3 : i32 to vector<32x128xi32>
    %5 = arith.remsi %1, %4 : vector<32x128xi32>
    %c0_i32_1 = arith.constant 0 : i32
    %6 = vector.broadcast %c0_i32_1 : i32 to vector<32x128xi32>
    %7 = arith.cmpi ne, %5, %6 : vector<32x128xi32>
    %c0_i32_2 = arith.constant 0 : i32
    %8 = vector.broadcast %c0_i32_2 : i32 to vector<32x128xi32>
    %9 = arith.cmpi slt, %5, %8 : vector<32x128xi32>
    %c0_i32_3 = arith.constant 0 : i32
    %10 = arith.cmpi slt, %3, %c0_i32_3 : i32
    %11 = vector.broadcast %10 : i1 to vector<32x128xi1>
    %12 = vector.broadcast %11 : vector<32x128xi1> to vector<32x128xi1>
    %13 = arith.xori %9, %12 : vector<32x128xi1>
    %14 = arith.andi %13, %7 : vector<32x128xi1>
    %15 = vector.broadcast %3 : i32 to vector<32x128xi32>
    %16 = arith.addi %5, %15 : vector<32x128xi32>
    %17 = arith.select %14, %16, %5 : vector<32x128xi1>, vector<32x128xi32>
    %c0_i32_4 = arith.constant 0 : i32
    %18 = vector.broadcast %c0_i32_4 : i32 to vector<32x128xi32>
    %19 = arith.cmpi eq, %17, %18 : vector<32x128xi32>
    %c15_i32 = arith.constant 15 : i32
    %20 = vector.broadcast %c15_i32 : i32 to vector<32x128xi32>
    %21 = arith.cmpi eq, %17, %20 : vector<32x128xi32>
    %c1_i32_5 = arith.constant 1 : i32
    %22 = tpu.dynamic_rotate %0 by %c1_i32_5 dim 0 : vector<32x128xf32>, i32 -> vector<32x128xf32>
    %cst = arith.constant 0.000000e+00 : f32
    %23 = vector.broadcast %cst : f32 to vector<32x128xf32>
    %24 = arith.select %19, %23, %22 : vector<32x128xi1>, vector<32x128xf32>
    %c31_i32 = arith.constant 31 : i32
    %25 = tpu.dynamic_rotate %0 by %c31_i32 dim 0 : vector<32x128xf32>, i32 -> vector<32x128xf32>
    %cst_6 = arith.constant 0.000000e+00 : f32
    %26 = vector.broadcast %cst_6 : f32 to vector<32x128xf32>
    %27 = arith.select %21, %26, %25 : vector<32x128xi1>, vector<32x128xf32>
    %28 = tpu.concatenate %24, %0, %27 in 1 : vector<32x128xf32>, vector<32x128xf32>, vector<32x128xf32> -> vector<32x384xf32>
    %29 = arith.truncf %28 : vector<32x384xf32> to vector<32x384xbf16>
    %c0_7 = arith.constant 0 : index
    %c0_8 = arith.constant 0 : index
    %30 = vector.load %arg1[%c0_7, %c0_8] : memref<384x128xbf16, #tpu.memory_space<vmem>>, vector<384x128xbf16>
    %cst_9 = arith.constant dense<0.000000e+00> : vector<32x128xf32>
    %31 = tpu.matmul %29, %30, %cst_9 {dimension_numbers = #tpu.dot_dimension_numbers<[1], [0], [0], [1], [0, 0, 1, 1], [], []>} : vector<32x384xbf16>, vector<384x128xbf16>, vector<32x128xf32> -> vector<32x128xf32>
    %c0_10 = arith.constant 0 : index
    %c0_11 = arith.constant 0 : index
    %32 = vector.load %arg3[%c0_10, %c0_11] : memref<1x128xf32, #tpu.memory_space<vmem>>, vector<1x128xf32>
    %33 = vector.broadcast %32 : vector<1x128xf32> to vector<32x128xf32>
    %34 = arith.addf %31, %33 : vector<32x128xf32>
    %cst_12 = arith.constant 0.000000e+00 : f32
    %35 = vector.broadcast %cst_12 : f32 to vector<32x128xf32>
    %36 = arith.maximumf %34, %35 : vector<32x128xf32>
    %c1_i32_13 = arith.constant 1 : i32
    %37 = tpu.dynamic_rotate %36 by %c1_i32_13 dim 0 : vector<32x128xf32>, i32 -> vector<32x128xf32>
    %cst_14 = arith.constant 0.000000e+00 : f32
    %38 = vector.broadcast %cst_14 : f32 to vector<32x128xf32>
    %39 = arith.select %19, %38, %37 : vector<32x128xi1>, vector<32x128xf32>
    %c31_i32_15 = arith.constant 31 : i32
    %40 = tpu.dynamic_rotate %36 by %c31_i32_15 dim 0 : vector<32x128xf32>, i32 -> vector<32x128xf32>
    %cst_16 = arith.constant 0.000000e+00 : f32
    %41 = vector.broadcast %cst_16 : f32 to vector<32x128xf32>
    %42 = arith.select %21, %41, %40 : vector<32x128xi1>, vector<32x128xf32>
    %43 = tpu.concatenate %39, %36, %42 in 1 : vector<32x128xf32>, vector<32x128xf32>, vector<32x128xf32> -> vector<32x384xf32>
    %44 = arith.truncf %43 : vector<32x384xf32> to vector<32x384xbf16>
    %c0_17 = arith.constant 0 : index
    %c0_18 = arith.constant 0 : index
    %45 = vector.load %arg2[%c0_17, %c0_18] : memref<384x128xbf16, #tpu.memory_space<vmem>>, vector<384x128xbf16>
    %cst_19 = arith.constant dense<0.000000e+00> : vector<32x128xf32>
    %46 = tpu.matmul %44, %45, %cst_19 {dimension_numbers = #tpu.dot_dimension_numbers<[1], [0], [0], [1], [0, 0, 1, 1], [], []>} : vector<32x384xbf16>, vector<384x128xbf16>, vector<32x128xf32> -> vector<32x128xf32>
    %c0_20 = arith.constant 0 : index
    %c0_21 = arith.constant 0 : index
    %47 = vector.load %arg4[%c0_20, %c0_21] : memref<1x128xf32, #tpu.memory_space<vmem>>, vector<1x128xf32>
    %48 = vector.broadcast %47 : vector<1x128xf32> to vector<32x128xf32>
    %49 = arith.addf %46, %48 : vector<32x128xf32>
    %50 = arith.addf %49, %0 : vector<32x128xf32>
    %cst_22 = arith.constant 0.000000e+00 : f32
    %51 = vector.broadcast %cst_22 : f32 to vector<32x128xf32>
    %52 = arith.maximumf %50, %51 : vector<32x128xf32>
    %c0_23 = arith.constant 0 : index
    %c0_24 = arith.constant 0 : index
    %53 = vector.load %arg5[%c0_23, %c0_24] : memref<32x128xf32, #tpu.memory_space<vmem>>, vector<32x128xf32>
    tpu.vector_store %arg5[%c0_23, %c0_24], %52 {strides = array<i32>} : memref<32x128xf32, #tpu.memory_space<vmem>>, vector<32x128xf32>,
    return
  }
}

</mosaic_0001>

<llo_original>
// kernel: basic_block_forward_rows.1
$region0: #{basic_block_forward_rows.1}
  #allocation0 [shape = 'u32[]', space=smem, size = 0x4, offset = 0x4, fixed_abs, tag = 'smem constant byte address 0x4 - core index']
  #allocation1 [shape = 'u32[144,128]{1,0:T(1,128)}', space=vmem, size = 0x12000, scoped, tag = 'internal scratch']
  %s0 = inlined_call_operand.hbm [shape: f32[32,128], index: 0, kind: input, shape index: {}]
  %s1 = inlined_call_operand.hbm [shape: bf16[384,128], index: 1, kind: input, shape index: {}]
  %s2 = inlined_call_operand.hbm [shape: bf16[384,128], index: 2, kind: input, shape index: {}]
  %s3 = inlined_call_operand.vmem [shape: f32[1,128], index: 3, kind: input, shape index: {}]
  %s4 = inlined_call_operand.vmem [shape: f32[1,128], index: 4, kind: input, shape index: {}]
  %s5 = inlined_call_operand.hbm [shape: f32[32,128], index: 5, kind: output, shape index: {}]
  %s6 = sld [smem:[#allocation0]]
  $region42: #{basic_block_forward_rows.1} parent=0
    _
  %s8 = ssub.s32 1, %s6
  %s9 = scalar_select 0, %s8, %s6
  $region1: #{basic_block_forward_rows.1} parent=0
    #allocation2 [shape = 'u8[16384]{0}', space=vmem, size = 0x4000, scoped, tag = 'input window, operand 0, single buffered']
    #allocation3 [shape = 's32[1]{0}', space=sflag, size = 0x4, scoped, tag = 'scoped memory for basic_block_forward_rows.1']
    #allocation4 [shape = 's32[1]{0}', space=sflag, size = 0x4, scoped, tag = 'scoped memory for basic_block_forward_rows.1']
    #allocation5 [shape = 'u8[98304]{0}', space=vmem, size = 0x18000, scoped, tag = 'input window, operand 1, single buffered']
    #allocation6 [shape = 's32[1]{0}', space=sflag, size = 0x4, scoped, tag = 'scoped memory for basic_block_forward_rows.1']
    #allocation7 [shape = 'u8[98304]{0}', space=vmem, size = 0x18000, scoped, tag = 'input window, operand 2, single buffered']
    #allocation8 [shape = 'u8[16384]{0}', space=vmem, size = 0x4000, scoped, tag = 'output window, operand 0, single buffered']
    %10 = vsyncpa [#allocation3], 0
    %11 = vsyncpa [#allocation6], 0
    %12 = vsyncpa [#allocation4], 0
    // Predicated region
    $region2: #{basic_block_forward_rows.1} parent=1 // pred_check
      _
    $region3: #{basic_block_forward_rows.1} parent=1 // pred_check_branch
      %14 = sbr.rel (0) target = $region5
    $region4: #{basic_block_forward_rows.1} parent=1 // pred_region
      %s16 = ssub.s32 512, 512
      %17 = vsyncadd [#allocation3], %s16
      %s18 = sshll.u32 [#allocation2], 4
      %s19 = int_to_ptr.vmem [resolvable:$true] %s18
      %24 = dma.hbm_to_vmem [thread:$0]  %s0, 512, %s19, [#allocation3], 128, 128, 8
    $region5: #{basic_block_forward_rows.1} parent=1 // pred_fallthru
      _
    // Predicated region
    $region6: #{basic_block_forward_rows.1} parent=1 // pred_check
      _
    $region7: #{basic_block_forward_rows.1} parent=1 // pred_check_branch
      %26 = sbr.rel (0) target = $region9
    $region8: #{basic_block_forward_rows.1} parent=1 // pred_region
      %s28 = ssub.s32 3072, 3072
      %29 = vsyncadd [#allocation6], %s28
      %s30 = sshll.u32 [#allocation5], 4
      %s31 = int_to_ptr.vmem [resolvable:$true] %s30
      %36 = dma.hbm_to_vmem [thread:$0]  %s1, 3072, %s31, [#allocation6], 64, 64, 4
    $region9: #{basic_block_forward_rows.1} parent=1 // pred_fallthru
      _
    // Predicated region
    $region10: #{basic_block_forward_rows.1} parent=1 // pred_check
      _
    $region11: #{basic_block_forward_rows.1} parent=1 // pred_check_branch
      %38 = sbr.rel (0) target = $region13
    $region12: #{basic_block_forward_rows.1} parent=1 // pred_region
      %s40 = ssub.s32 3072, 3072
      %41 = vsyncadd [#allocation6], %s40
      %s42 = sshll.u32 [#allocation7], 4
      %s43 = int_to_ptr.vmem [resolvable:$true] %s42
      %48 = dma.hbm_to_vmem [thread:$0]  %s2, 3072, %s43, [#allocation6], 64, 64, 4
    $region13: #{basic_block_forward_rows.1} parent=1 // pred_fallthru
      _
    // Predicated region
    $region14: #{basic_block_forward_rows.1} parent=1 // pred_check
      _
    $region15: #{basic_block_forward_rows.1} parent=1 // pred_check_branch
      %50 = sbr.rel (0) target = $region17
    $region16: #{basic_block_forward_rows.1} parent=1 // pred_region
      _
    $region17: #{basic_block_forward_rows.1} parent=1 // pred_fallthru
      _
    // Predicated region
    $region18: #{basic_block_forward_rows.1} parent=1 // pred_check
      _
    $region19: #{basic_block_forward_rows.1} parent=1 // pred_check_branch
      %52 = sbr.rel (0) target = $region21
    $region20: #{basic_block_forward_rows.1} parent=1 // pred_region
      _
    $region21: #{basic_block_forward_rows.1} parent=1 // pred_fallthru
      _
    // Predicated region
    $region22: #{basic_block_forward_rows.1} parent=1 // pred_check
      _
    $region23: #{basic_block_forward_rows.1} parent=1 // pred_check_branch
      %54 = sbr.rel (0) target = $region25
    $region24: #{basic_block_forward_rows.1} parent=1 // pred_region
      %55 = dma.done [#allocation3], 512
    $region25: #{basic_block_forward_rows.1} parent=1 // pred_fallthru
      _
    // Predicated region
    $region26: #{basic_block_forward_rows.1} parent=1 // pred_check
      _
    $region27: #{basic_block_forward_rows.1} parent=1 // pred_check_branch
      %57 = sbr.rel (0) target = $region29
    $region28: #{basic_block_forward_rows.1} parent=1 // pred_region
      %58 = dma.done [#allocation6], 3072
    $region29: #{basic_block_forward_rows.1} parent=1 // pred_fallthru
      _
    // Predicated region
    $region30: #{basic_block_forward_rows.1} parent=1 // pred_check
      _
    $region31: #{basic_block_forward_rows.1} parent=1 // pred_check_branch
      %60 = sbr.rel (0) target = $region33
    $region32: #{basic_block_forward_rows.1} parent=1 // pred_region
      %61 = dma.done [#allocation6], 3072
    $region33: #{basic_block_forward_rows.1} parent=1 // pred_fallthru
      _
    %v63 = vld [vmem:[#allocation2] sm:$0xff]
    %v64 = vld [vmem:[#allocation2 + $0x8] sm:$0xff]
    %v65 = vld [vmem:[#allocation2 + $0x10] sm:$0xff]
    %v66 = vld [vmem:[#allocation2 + $0x18] sm:$0xff]
    %v67 = vlaneseq
    %v68 = vshrl.u32 %v67, 7
    %v69 = vadd.s32 %v68, 8
    %v70 = vadd.s32 %v68, 16
    %v71 = vadd.s32 %v68, 24
    %vm72 = vcmp.lt.s32.totalorder %v68, 0
    %v73 = vsub.s32 0, %v68
    %v74 = vsel %vm72, %v73, %v68
    %v75 = vshrl.u32 %v74, 4
    %v76 = vand.u32 %v74, 15
    %v77 = vsub.s32 0, %v76
    %v78 = vsel %vm72, %v77, %v76
    %vm79 = vcmp.lt.s32.totalorder %v69, 0
    %v80 = vsub.s32 0, %v69
    %v81 = vsel %vm79, %v80, %v69
    %v82 = vshrl.u32 %v81, 4
    %v83 = vand.u32 %v81, 15
    %v84 = vsub.s32 0, %v83
    %v85 = vsel %vm79, %v84, %v83
    %vm86 = vcmp.lt.s32.totalorder %v70, 0
    %v87 = vsub.s32 0, %v70
    %v88 = vsel %vm86, %v87, %v70
    %v89 = vshrl.u32 %v88, 4
    %v90 = vand.u32 %v88, 15
    %v91 = vsub.s32 0, %v90
    %v92 = vsel %vm86, %v91, %v90
    %vm93 = vcmp.lt.s32.totalorder %v71, 0
    %v94 = vsub.s32 0, %v71
    %v95 = vsel %vm93, %v94, %v71
    %v96 = vshrl.u32 %v95, 4
    %v97 = vand.u32 %v95, 15
    %v98 = vsub.s32 0, %v97
    %v99 = vsel %vm93, %v98, %v97
    %vm100 = vcmp.ne.s32.totalorder %v78, 0
    %vm101 = vcmp.ne.s32.totalorder %v85, 0
    %vm102 = vcmp.ne.s32.totalorder %v92, 0
    %vm103 = vcmp.ne.s32.totalorder %v99, 0
    %vm104 = vcmp.lt.s32.totalorder %v78, 0
    %vm105 = vcmp.lt.s32.totalorder %v85, 0
    %vm106 = vcmp.lt.s32.totalorder %v92, 0
    %vm107 = vcmp.lt.s32.totalorder %v99, 0
    %vm108 = vmand %vm104, %vm100
    %vm109 = vmand %vm105, %vm101
    %vm110 = vmand %vm106, %vm102
    %vm111 = vmand %vm107, %vm103
    %v112 = vadd.s32 %v78, 16
    %v113 = vadd.s32 %v85, 16
    %v114 = vadd.s32 %v92, 16
    %v115 = vadd.s32 %v99, 16
    %v116 = vsel %vm108, %v112, %v78
    %v117 = vsel %vm109, %v113, %v85
    %v118 = vsel %vm110, %v114, %v92
    %v119 = vsel %vm111, %v115, %v99
    %vm120 = vcmp.eq.s32.totalorder %v116, 0
    %vm121 = vcmp.eq.s32.totalorder %v117, 0
    %vm122 = vcmp.eq.s32.totalorder %v118, 0
    %vm123 = vcmp.eq.s32.totalorder %v119, 0
    %vm124 = vcmp.eq.s32.totalorder %v116, 15
    %vm125 = vcmp.eq.s32.totalorder %v117, 15
    %vm126 = vcmp.eq.s32.totalorder %v118, 15
    %vm127 = vcmp.eq.s32.totalorder %v119, 15
    %v128 = vrot.slane %v63, 7
    %v129 = vrot.slane %v64, 7
    %v130 = vrot.slane %v65, 7
    %v131 = vrot.slane %v66, 7
    %vm132 = vcmp.lt.s32.totalorder %v68, 1
    %v133 = vsel %vm132, %v130, %v131
    %v134 = vsel %vm132, %v129, %v130
    %v135 = vsel %vm132, %v128, %v129
    %v136 = vsel %vm132, %v131, %v128
    %v137 = vsel %vm120, 0.0, %v136
    %v138 = vsel %vm121, 0.0, %v135
    %v139 = vsel %vm122, 0.0, %v134
    %v140 = vsel %vm123, 0.0, %v133
    %v141 = vrot.slane %v63, 1
    %v142 = vrot.slane %v64, 1
    %v143 = vrot.slane %v65, 1
    %v144 = vrot.slane %v66, 1
    %vm145 = vcmp.lt.s32.totalorder %v68, 7
    %v146 = vsel %vm145, %v143, %v144
    %v147 = vsel %vm145, %v142, %v143
    %v148 = vsel %vm145, %v141, %v142
    %v149 = vsel %vm145, %v144, %v141
    %v150 = vsel %vm124, 0.0, %v148
    %v151 = vsel %vm125, 0.0, %v147
    %v152 = vsel %vm126, 0.0, %v146
    %v153 = vsel %vm127, 0.0, %v149
    %v154 = vpack.c.bf16 %v138, %v137
    %v155 = vpack.c.bf16 %v64, %v63
    %v156 = vpack.c.bf16 %v151, %v150
    %v157 = vpack.c.bf16 %v140, %v139
    %v158 = vpack.c.bf16 %v66, %v65
    %v159 = vpack.c.bf16 %v153, %v152
    %v160 = vld [vmem:[#allocation5] sm:$0xf]
    %v161 = vld [vmem:[#allocation5 + $0x4] sm:$0xf]
    %v162 = vld [vmem:[#allocation5 + $0x8] sm:$0xf]
    %v163 = vld [vmem:[#allocation5 + $0xc] sm:$0xf]
    %v164 = vld [vmem:[#allocation5 + $0x10] sm:$0xf]
    %v165 = vld [vmem:[#allocation5 + $0x14] sm:$0xf]
    %v166 = vld [vmem:[#allocation5 + $0x18] sm:$0xf]
    %v167 = vld [vmem:[#allocation5 + $0x1c] sm:$0xf]
    %v168 = vld [vmem:[#allocation5 + $0x20] sm:$0xf]
    %v169 = vld [vmem:[#allocation5 + $0x24] sm:$0xf]
    %v170 = vld [vmem:[#allocation5 + $0x28] sm:$0xf]
    %v171 = vld [vmem:[#allocation5 + $0x2c] sm:$0xf]
    %v172 = vld [vmem:[#allocation5 + $0x30] sm:$0xf]
    %v173 = vld [vmem:[#allocation5 + $0x34] sm:$0xf]
    %v174 = vld [vmem:[#allocation5 + $0x38] sm:$0xf]
    %v175 = vld [vmem:[#allocation5 + $0x3c] sm:$0xf]
    %v176 = vld [vmem:[#allocation5 + $0x40] sm:$0xf]
    %v177 = vld [vmem:[#allocation5 + $0x44] sm:$0xf]
    %v178 = vld [vmem:[#allocation5 + $0x48] sm:$0xf]
    %v179 = vld [vmem:[#allocation5 + $0x4c] sm:$0xf]
    %v180 = vld [vmem:[#allocation5 + $0x50] sm:$0xf]
    %v181 = vld [vmem:[#allocation5 + $0x54] sm:$0xf]
    %v182 = vld [vmem:[#allocation5 + $0x58] sm:$0xf]
    %v183 = vld [vmem:[#allocation5 + $0x5c] sm:$0xf]
    %v184 = vld [vmem:[#allocation5 + $0x60] sm:$0xf]
    %v185 = vld [vmem:[#allocation5 + $0x64] sm:$0xf]
    %v186 = vld [vmem:[#allocation5 + $0x68] sm:$0xf]
    %v187 = vld [vmem:[#allocation5 + $0x6c] sm:$0xf]
    %v188 = vld [vmem:[#allocation5 + $0x70] sm:$0xf]
    %v189 = vld [vmem:[#allocation5 + $0x74] sm:$0xf]
    %v190 = vld [vmem:[#allocation5 + $0x78] sm:$0xf]
    %v191 = vld [vmem:[#allocation5 + $0x7c] sm:$0xf]
    %v192 = vld [vmem:[#allocation5 + $0x80] sm:$0xf]
    %v193 = vld [vmem:[#allocation5 + $0x84] sm:$0xf]
    %v194 = vld [vmem:[#allocation5 + $0x88] sm:$0xf]
    %v195 = vld [vmem:[#allocation5 + $0x8c] sm:$0xf]
    %v196 = vld [vmem:[#allocation5 + $0x90] sm:$0xf]
    %v197 = vld [vmem:[#allocation5 + $0x94] sm:$0xf]
    %v198 = vld [vmem:[#allocation5 + $0x98] sm:$0xf]
    %v199 = vld [vmem:[#allocation5 + $0x9c] sm:$0xf]
    %v200 = vld [vmem:[#allocation5 + $0xa0] sm:$0xf]
    %v201 = vld [vmem:[#allocation5 + $0xa4] sm:$0xf]
    %v202 = vld [vmem:[#allocation5 + $0xa8] sm:$0xf]
    %v203 = vld [vmem:[#allocation5 + $0xac] sm:$0xf]
    %v204 = vld [vmem:[#allocation5 + $0xb0] sm:$0xf]
    %v205 = vld [vmem:[#allocation5 + $0xb4] sm:$0xf]
    %v206 = vld [vmem:[#allocation5 + $0xb8] sm:$0xf]
    %v207 = vld [vmem:[#allocation5 + $0xbc] sm:$0xf]
    %v208 = vld [vmem:[%s3] sm:$0x1]
    %v210 = vlaneseq
    %v211 = vshrl.u32 %v210, 7
    %v212 = vsub.s32 0, %v211
    %v213 = vrot.slane %v208, %v212
    %v263 = vunpack.c.l.b16 %v160
    %v264 = vunpack.c.l.b16 %v161
    %v265 = vunpack.c.l.b16 %v162
    %v266 = vunpack.c.l.b16 %v163
    %v267 = vunpack.c.l.b16 %v164
    %v268 = vunpack.c.l.b16 %v165
    %v269 = vunpack.c.l.b16 %v166
    %v270 = vunpack.c.l.b16 %v167
    %v271 = vunpack.c.l.b16 %v168
    %v272 = vunpack.c.l.b16 %v169
    %v273 = vunpack.c.l.b16 %v170
    %v274 = vunpack.c.l.b16 %v171
    %v275 = vunpack.c.l.b16 %v172
    %v276 = vunpack.c.l.b16 %v173
    %v277 = vunpack.c.l.b16 %v174
    %v278 = vunpack.c.l.b16 %v175
    %v279 = vunpack.c.l.b16 %v176
    %v280 = vunpack.c.l.b16 %v177
    %v281 = vunpack.c.l.b16 %v178
    %v282 = vunpack.c.l.b16 %v179
    %v283 = vunpack.c.l.b16 %v180
    %v284 = vunpack.c.l.b16 %v181
    %v285 = vunpack.c.l.b16 %v182
    %v286 = vunpack.c.l.b16 %v183
    %v287 = vunpack.c.l.b16 %v184
    %v288 = vunpack.c.l.b16 %v185
    %v289 = vunpack.c.l.b16 %v186
    %v290 = vunpack.c.l.b16 %v187
    %v291 = vunpack.c.l.b16 %v188
    %v292 = vunpack.c.l.b16 %v189
    %v293 = vunpack.c.l.b16 %v190
    %v294 = vunpack.c.l.b16 %v191
    %v295 = vunpack.c.l.b16 %v192
    %v296 = vunpack.c.l.b16 %v193
    %v297 = vunpack.c.l.b16 %v194
    %v298 = vunpack.c.l.b16 %v195
    %v299 = vunpack.c.l.b16 %v196
    %v300 = vunpack.c.l.b16 %v197
    %v301 = vunpack.c.l.b16 %v198
    %v302 = vunpack.c.l.b16 %v199
    %v303 = vunpack.c.l.b16 %v200
    %v304 = vunpack.c.l.b16 %v201
    %v305 = vunpack.c.l.b16 %v202
    %v306 = vunpack.c.l.b16 %v203
    %v307 = vunpack.c.l.b16 %v204
    %v308 = vunpack.c.l.b16 %v205
    %v309 = vunpack.c.l.b16 %v206
    %v310 = vunpack.c.l.b16 %v207
    %v311 = vpack.c.b16 %v264, %v263
    %v312 = vpack.c.b16 %v266, %v265
    %v313 = vpack.c.b16 %v268, %v267
    %v314 = vpack.c.b16 %v270, %v269
    %v315 = vpack.c.b16 %v272, %v271
    %v316 = vpack.c.b16 %v274, %v273
    %v317 = vpack.c.b16 %v276, %v275
    %v318 = vpack.c.b16 %v278, %v277
    %v319 = vpack.c.b16 %v280, %v279
    %v320 = vpack.c.b16 %v282, %v281
    %v321 = vpack.c.b16 %v284, %v283
    %v322 = vpack.c.b16 %v286, %v285
    %v323 = vpack.c.b16 %v288, %v287
    %v324 = vpack.c.b16 %v290, %v289
    %v325 = vpack.c.b16 %v292, %v291
    %v326 = vpack.c.b16 %v294, %v293
    %v327 = vpack.c.b16 %v296, %v295
    %v328 = vpack.c.b16 %v298, %v297
    %v329 = vpack.c.b16 %v300, %v299
    %v330 = vpack.c.b16 %v302, %v301
    %v331 = vpack.c.b16 %v304, %v303
    %v332 = vpack.c.b16 %v306, %v305
    %v333 = vpack.c.b16 %v308, %v307
    %v334 = vpack.c.b16 %v310, %v309
    %359 = vmatprep.subr.bf16.mxu0 0
    %360 = vmatpush1.bf16.msra.mxu0 %v318
    %361 = vmatprep.subr.bf16.mxu0 0
    %362 = vmatpush1.bf16.msra.mxu0 %v317
    %363 = vmatprep.subr.bf16.mxu0 0
    %364 = vmatpush1.bf16.msra.mxu0 %v316
    %365 = vmatprep.subr.bf16.mxu0 0
    %366 = vmatpush1.bf16.msra.mxu0 %v315
    %367 = vmatprep.subr.bf16.mxu0 0
    %368 = vmatpush1.bf16.msra.mxu0 %v314
    %369 = vmatprep.subr.bf16.mxu0 0
    %370 = vmatpush1.bf16.msra.mxu0 %v313
    %371 = vmatprep.subr.bf16.mxu0 0
    %372 = vmatpush1.bf16.msra.mxu0 %v312
    %373 = vmatprep.subr.bf16.mxu0 0
    %374 = vmatpush1.bf16.msra.mxu0 %v311
    %375 = vmatprep.subr.bf16.mxu0 0
    %376 = vmatpush2.bf16.msra.mxu0 %v326
    %377 = vmatprep.subr.bf16.mxu0 0
    %378 = vmatpush2.bf16.msra.mxu0 %v325
    %379 = vmatprep.subr.bf16.mxu0 0
    %380 = vmatpush2.bf16.msra.mxu0 %v324
    %381 = vmatprep.subr.bf16.mxu0 0
    %382 = vmatpush2.bf16.msra.mxu0 %v323
    %383 = vmatprep.subr.bf16.mxu0 0
    %384 = vmatpush2.bf16.msra.mxu0 %v322
    %385 = vmatprep.subr.bf16.mxu0 0
    %386 = vmatpush2.bf16.msra.mxu0 %v321
    %387 = vmatprep.subr.bf16.mxu0 0
    %388 = vmatpush2.bf16.msra.mxu0 %v320
    %389 = vmatprep.subr.bf16.mxu0 0
    %390 = vmatpush2.bf16.msra.mxu0 %v319
    %391 = vmatprep.mubr.bf16.mxu0 %v155
    %392 = vmatmul.mubr.bf16.gmra.mxu0 %v154
    %v393 = vpop.f32.mrf.mxu0
    %v394 = vadd.f32 %v213, %v393
    %v395 = vpop.f32.mrf.mxu0
    %v396 = vpop.f32.mrf.mxu0
    %v397 = vadd.f32 %v213, %v396
    %v398 = vpop.f32.mrf.mxu0
    %399 = vmatprep.mubr.bf16.mxu0 %v158
    %400 = vmatmul.mubr.bf16.gmra.mxu0 %v157
    %v401 = vpop.f32.mrf.mxu0
    %v402 = vadd.f32 %v213, %v401
    %v403 = vpop.f32.mrf.mxu0
    %v404 = vpop.f32.mrf.mxu0
    %v405 = vadd.f32 %v213, %v404
    %v406 = vpop.f32.mrf.mxu0
    %407 = vdwg.mxu0
    %408 = vmatprep.subr.bf16.mxu0 0
    %409 = vmatpush1.bf16.msra.mxu0 %v334
    %410 = vmatprep.subr.bf16.mxu0 0
    %411 = vmatpush1.bf16.msra.mxu0 %v333
    %412 = vmatprep.subr.bf16.mxu0 0
    %413 = vmatpush1.bf16.msra.mxu0 %v332
    %414 = vmatprep.subr.bf16.mxu0 0
    %415 = vmatpush1.bf16.msra.mxu0 %v331
    %416 = vmatprep.subr.bf16.mxu0 0
    %417 = vmatpush1.bf16.msra.mxu0 %v330
    %418 = vmatprep.subr.bf16.mxu0 0
    %419 = vmatpush1.bf16.msra.mxu0 %v329
    %420 = vmatprep.subr.bf16.mxu0 0
    %421 = vmatpush1.bf16.msra.mxu0 %v328
    %422 = vmatprep.subr.bf16.mxu0 0
    %423 = vmatpush1.bf16.msra.mxu0 %v327
    %424 = vmatprep.subr.bf16.mxu0 0
    %425 = vmatpush2.bf16.msra.mxu0 0
    %426 = vmatprep.subr.bf16.mxu0 0
    %427 = vmatpush2.bf16.msra.mxu0 0
    %428 = vmatprep.subr.bf16.mxu0 0
    %429 = vmatpush2.bf16.msra.mxu0 0
    %430 = vmatprep.subr.bf16.mxu0 0
    %431 = vmatpush2.bf16.msra.mxu0 0
    %432 = vmatprep.subr.bf16.mxu0 0
    %433 = vmatpush2.bf16.msra.mxu0 0
    %434 = vmatprep.subr.bf16.mxu0 0
    %435 = vmatpush2.bf16.msra.mxu0 0
    %436 = vmatprep.subr.bf16.mxu0 0
    %437 = vmatpush2.bf16.msra.mxu0 0
    %438 = vmatprep.subr.bf16.mxu0 0
    %439 = vmatpush2.bf16.msra.mxu0 0
    %440 = vmatprep.mubr.bf16.mxu0 0
    %441 = vmatmul.mubr.bf16.gmra.mxu0 %v156
    %v442 = vpop.f32.mrf.mxu0
    %v443 = vadd.f32 %v394, %v442
    %v444 = vpop.f32.mrf.mxu0
    %v445 = vpop.f32.mrf.mxu0
    %v446 = vadd.f32 %v397, %v445
    %v447 = vpop.f32.mrf.mxu0
    %448 = vmatprep.mubr.bf16.mxu0 0
    %449 = vmatmul.mubr.bf16.gmra.mxu0 %v159
    %v450 = vpop.f32.mrf.mxu0
    %v451 = vadd.f32 %v402, %v450
    %v452 = vpop.f32.mrf.mxu0
    %v453 = vpop.f32.mrf.mxu0
    %v454 = vadd.f32 %v405, %v453
    %v455 = vpop.f32.mrf.mxu0
    %456 = vdwg.mxu0
    %v457 = vmax.f32 %v443, 0.0
    %v458 = vmax.f32 %v446, 0.0
    %v459 = vmax.f32 %v451, 0.0
    %v460 = vmax.f32 %v454, 0.0
    %v461 = vrot.slane %v457, 7
    %v462 = vrot.slane %v458, 7
    %v463 = vrot.slane %v459, 7
    %v464 = vrot.slane %v460, 7
    %v465 = vsel %vm132, %v463, %v464
    %v466 = vsel %vm132, %v462, %v463
    %v467 = vsel %vm132, %v461, %v462
    %v468 = vsel %vm132, %v464, %v461
    %v469 = vsel %vm120, 0.0, %v468
    %v470 = vsel %vm121, 0.0, %v467
    %v471 = vsel %vm122, 0.0, %v466
    %v472 = vsel %vm123, 0.0, %v465
    %v473 = vrot.slane %v457, 1
    %v474 = vrot.slane %v458, 1
    %v475 = vrot.slane %v459, 1
    %v476 = vrot.slane %v460, 1
    %v477 = vsel %vm145, %v475, %v476
    %v478 = vsel %vm145, %v474, %v475
    %v479 = vsel %vm145, %v473, %v474
    %v480 = vsel %vm145, %v476, %v473
    %v481 = vsel %vm124, 0.0, %v479
    %v482 = vsel %vm125, 0.0, %v478
    %v483 = vsel %vm126, 0.0, %v477
    %v484 = vsel %vm127, 0.0, %v480
    %v485 = vpack.c.bf16 %v470, %v469
    %v486 = vpack.c.bf16 %v458, %v457
    %v487 = vpack.c.bf16 %v482, %v481
    %v488 = vpack.c.bf16 %v472, %v471
    %v489 = vpack.c.bf16 %v460, %v459
    %v490 = vpack.c.bf16 %v484, %v483
    %v491 = vld [vmem:[#allocation7] sm:$0xf]
    %v492 = vld [vmem:[#allocation7 + $0x4] sm:$0xf]
    %v493 = vld [vmem:[#allocation7 + $0x8] sm:$0xf]
    %v494 = vld [vmem:[#allocation7 + $0xc] sm:$0xf]
    %v495 = vld [vmem:[#allocation7 + $0x10] sm:$0xf]
    %v496 = vld [vmem:[#allocation7 + $0x14] sm:$0xf]
    %v497 = vld [vmem:[#allocation7 + $0x18] sm:$0xf]
    %v498 = vld [vmem:[#allocation7 + $0x1c] sm:$0xf]
    %v499 = vld [vmem:[#allocation7 + $0x20] sm:$0xf]
    %v500 = vld [vmem:[#allocation7 + $0x24] sm:$0xf]
    %v501 = vld [vmem:[#allocation7 + $0x28] sm:$0xf]
    %v502 = vld [vmem:[#allocation7 + $0x2c] sm:$0xf]
    %v503 = vld [vmem:[#allocation7 + $0x30] sm:$0xf]
    %v504 = vld [vmem:[#allocation7 + $0x34] sm:$0xf]
    %v505 = vld [vmem:[#allocation7 + $0x38] sm:$0xf]
    %v506 = vld [vmem:[#allocation7 + $0x3c] sm:$0xf]
    %v507 = vld [vmem:[#allocation7 + $0x40] sm:$0xf]
    %v508 = vld [vmem:[#allocation7 + $0x44] sm:$0xf]
    %v509 = vld [vmem:[#allocation7 + $0x48] sm:$0xf]
    %v510 = vld [vmem:[#allocation7 + $0x4c] sm:$0xf]
    %v511 = vld [vmem:[#allocation7 + $0x50] sm:$0xf]
    %v512 = vld [vmem:[#allocation7 + $0x54] sm:$0xf]
    %v513 = vld [vmem:[#allocation7 + $0x58] sm:$0xf]
    %v514 = vld [vmem:[#allocation7 + $0x5c] sm:$0xf]
    %v515 = vld [vmem:[#allocation7 + $0x60] sm:$0xf]
    %v516 = vld [vmem:[#allocation7 + $0x64] sm:$0xf]
    %v517 = vld [vmem:[#allocation7 + $0x68] sm:$0xf]
    %v518 = vld [vmem:[#allocation7 + $0x6c] sm:$0xf]
    %v519 = vld [vmem:[#allocation7 + $0x70] sm:$0xf]
    %v520 = vld [vmem:[#allocation7 + $0x74] sm:$0xf]
    %v521 = vld [vmem:[#allocation7 + $0x78] sm:$0xf]
    %v522 = vld [vmem:[#allocation7 + $0x7c] sm:$0xf]
    %v523 = vld [vmem:[#allocation7 + $0x80] sm:$0xf]
    %v524 = vld [vmem:[#allocation7 + $0x84] sm:$0xf]
    %v525 = vld [vmem:[#allocation7 + $0x88] sm:$0xf]
    %v526 = vld [vmem:[#allocation7 + $0x8c] sm:$0xf]
    %v527 = vld [vmem:[#allocation7 + $0x90] sm:$0xf]
    %v528 = vld [vmem:[#allocation7 + $0x94] sm:$0xf]
    %v529 = vld [vmem:[#allocation7 + $0x98] sm:$0xf]
    %v530 = vld [vmem:[#allocation7 + $0x9c] sm:$0xf]
    %v531 = vld [vmem:[#allocation7 + $0xa0] sm:$0xf]
    %v532 = vld [vmem:[#allocation7 + $0xa4] sm:$0xf]
    %v533 = vld [vmem:[#allocation7 + $0xa8] sm:$0xf]
    %v534 = vld [vmem:[#allocation7 + $0xac] sm:$0xf]
    %v535 = vld [vmem:[#allocation7 + $0xb0] sm:$0xf]
    %v536 = vld [vmem:[#allocation7 + $0xb4] sm:$0xf]
    %v537 = vld [vmem:[#allocation7 + $0xb8] sm:$0xf]
    %v538 = vld [vmem:[#allocation7 + $0xbc] sm:$0xf]
    %v539 = vld [vmem:[%s4] sm:$0x1]
    %v541 = vlaneseq
    %v542 = vshrl.u32 %v541, 7
    %v543 = vsub.s32 0, %v542
    %v544 = vrot.slane %v539, %v543
    %v594 = vunpack.c.l.b16 %v491
    %v595 = vunpack.c.l.b16 %v492
    %v596 = vunpack.c.l.b16 %v493
    %v597 = vunpack.c.l.b16 %v494
    %v598 = vunpack.c.l.b16 %v495
    %v599 = vunpack.c.l.b16 %v496
    %v600 = vunpack.c.l.b16 %v497
    %v601 = vunpack.c.l.b16 %v498
    %v602 = vunpack.c.l.b16 %v499
    %v603 = vunpack.c.l.b16 %v500
    %v604 = vunpack.c.l.b16 %v501
    %v605 = vunpack.c.l.b16 %v502
    %v606 = vunpack.c.l.b16 %v503
    %v607 = vunpack.c.l.b16 %v504
    %v608 = vunpack.c.l.b16 %v505
    %v609 = vunpack.c.l.b16 %v506
    %v610 = vunpack.c.l.b16 %v507
    %v611 = vunpack.c.l.b16 %v508
    %v612 = vunpack.c.l.b16 %v509
    %v613 = vunpack.c.l.b16 %v510
    %v614 = vunpack.c.l.b16 %v511
    %v615 = vunpack.c.l.b16 %v512
    %v616 = vunpack.c.l.b16 %v513
    %v617 = vunpack.c.l.b16 %v514
    %v618 = vunpack.c.l.b16 %v515
    %v619 = vunpack.c.l.b16 %v516
    %v620 = vunpack.c.l.b16 %v517
    %v621 = vunpack.c.l.b16 %v518
    %v622 = vunpack.c.l.b16 %v519
    %v623 = vunpack.c.l.b16 %v520
    %v624 = vunpack.c.l.b16 %v521
    %v625 = vunpack.c.l.b16 %v522
    %v626 = vunpack.c.l.b16 %v523
    %v627 = vunpack.c.l.b16 %v524
    %v628 = vunpack.c.l.b16 %v525
    %v629 = vunpack.c.l.b16 %v526
    %v630 = vunpack.c.l.b16 %v527
    %v631 = vunpack.c.l.b16 %v528
    %v632 = vunpack.c.l.b16 %v529
    %v633 = vunpack.c.l.b16 %v530
    %v634 = vunpack.c.l.b16 %v531
    %v635 = vunpack.c.l.b16 %v532
    %v636 = vunpack.c.l.b16 %v533
    %v637 = vunpack.c.l.b16 %v534
    %v638 = vunpack.c.l.b16 %v535
    %v639 = vunpack.c.l.b16 %v536
    %v640 = vunpack.c.l.b16 %v537
    %v641 = vunpack.c.l.b16 %v538
    %v642 = vpack.c.b16 %v595, %v594
    %v643 = vpack.c.b16 %v597, %v596
    %v644 = vpack.c.b16 %v599, %v598
    %v645 = vpack.c.b16 %v601, %v600
    %v646 = vpack.c.b16 %v603, %v602
    %v647 = vpack.c.b16 %v605, %v604
    %v648 = vpack.c.b16 %v607, %v606
    %v649 = vpack.c.b16 %v609, %v608
    %v650 = vpack.c.b16 %v611, %v610
    %v651 = vpack.c.b16 %v613, %v612
    %v652 = vpack.c.b16 %v615, %v614
    %v653 = vpack.c.b16 %v617, %v616
    %v654 = vpack.c.b16 %v619, %v618
    %v655 = vpack.c.b16 %v621, %v620
    %v656 = vpack.c.b16 %v623, %v622
    %v657 = vpack.c.b16 %v625, %v624
    %v658 = vpack.c.b16 %v627, %v626
    %v659 = vpack.c.b16 %v629, %v628
    %v660 = vpack.c.b16 %v631, %v630
    %v661 = vpack.c.b16 %v633, %v632
    %v662 = vpack.c.b16 %v635, %v634
    %v663 = vpack.c.b16 %v637, %v636
    %v664 = vpack.c.b16 %v639, %v638
    %v665 = vpack.c.b16 %v641, %v640
    %690 = vmatprep.subr.bf16.mxu0 0
    %691 = vmatpush1.bf16.msra.mxu0 %v649
    %692 = vmatprep.subr.bf16.mxu0 0
    %693 = vmatpush1.bf16.msra.mxu0 %v648
    %694 = vmatprep.subr.bf16.mxu0 0
    %695 = vmatpush1.bf16.msra.mxu0 %v647
    %696 = vmatprep.subr.bf16.mxu0 0
    %697 = vmatpush1.bf16.msra.mxu0 %v646
    %698 = vmatprep.subr.bf16.mxu0 0
    %699 = vmatpush1.bf16.msra.mxu0 %v645
    %700 = vmatprep.subr.bf16.mxu0 0
    %701 = vmatpush1.bf16.msra.mxu0 %v644
    %702 = vmatprep.subr.bf16.mxu0 0
    %703 = vmatpush1.bf16.msra.mxu0 %v643
    %704 = vmatprep.subr.bf16.mxu0 0
    %705 = vmatpush1.bf16.msra.mxu0 %v642
    %706 = vmatprep.subr.bf16.mxu0 0
    %707 = vmatpush2.bf16.msra.mxu0 %v657
    %708 = vmatprep.subr.bf16.mxu0 0
    %709 = vmatpush2.bf16.msra.mxu0 %v656
    %710 = vmatprep.subr.bf16.mxu0 0
    %711 = vmatpush2.bf16.msra.mxu0 %v655
    %712 = vmatprep.subr.bf16.mxu0 0
    %713 = vmatpush2.bf16.msra.mxu0 %v654
    %714 = vmatprep.subr.bf16.mxu0 0
    %715 = vmatpush2.bf16.msra.mxu0 %v653
    %716 = vmatprep.subr.bf16.mxu0 0
    %717 = vmatpush2.bf16.msra.mxu0 %v652
    %718 = vmatprep.subr.bf16.mxu0 0
    %719 = vmatpush2.bf16.msra.mxu0 %v651
    %720 = vmatprep.subr.bf16.mxu0 0
    %721 = vmatpush2.bf16.msra.mxu0 %v650
    %722 = vmatprep.mubr.bf16.mxu0 %v486
    %723 = vmatmul.mubr.bf16.gmra.mxu0 %v485
    %v724 = vpop.f32.mrf.mxu0
    %v725 = vadd.f32 %v544, %v724
    %v726 = vpop.f32.mrf.mxu0
    %v727 = vpop.f32.mrf.mxu0
    %v728 = vadd.f32 %v544, %v727
    %v729 = vpop.f32.mrf.mxu0
    %730 = vmatprep.mubr.bf16.mxu0 %v489
    %731 = vmatmul.mubr.bf16.gmra.mxu0 %v488
    %v732 = vpop.f32.mrf.mxu0
    %v733 = vadd.f32 %v544, %v732
    %v734 = vpop.f32.mrf.mxu0
    %v735 = vpop.f32.mrf.mxu0
    %v736 = vadd.f32 %v544, %v735
    %v737 = vpop.f32.mrf.mxu0
    %738 = vdwg.mxu0
    %739 = vmatprep.subr.bf16.mxu0 0
    %740 = vmatpush1.bf16.msra.mxu0 %v665
    %741 = vmatprep.subr.bf16.mxu0 0
    %742 = vmatpush1.bf16.msra.mxu0 %v664
    %743 = vmatprep.subr.bf16.mxu0 0
    %744 = vmatpush1.bf16.msra.mxu0 %v663
    %745 = vmatprep.subr.bf16.mxu0 0
    %746 = vmatpush1.bf16.msra.mxu0 %v662
    %747 = vmatprep.subr.bf16.mxu0 0
    %748 = vmatpush1.bf16.msra.mxu0 %v661
    %749 = vmatprep.subr.bf16.mxu0 0
    %750 = vmatpush1.bf16.msra.mxu0 %v660
    %751 = vmatprep.subr.bf16.mxu0 0
    %752 = vmatpush1.bf16.msra.mxu0 %v659
    %753 = vmatprep.subr.bf16.mxu0 0
    %754 = vmatpush1.bf16.msra.mxu0 %v658
    %755 = vmatprep.subr.bf16.mxu0 0
    %756 = vmatpush2.bf16.msra.mxu0 0
    %757 = vmatprep.subr.bf16.mxu0 0
    %758 = vmatpush2.bf16.msra.mxu0 0
    %759 = vmatprep.subr.bf16.mxu0 0
    %760 = vmatpush2.bf16.msra.mxu0 0
    %761 = vmatprep.subr.bf16.mxu0 0
    %762 = vmatpush2.bf16.msra.mxu0 0
    %763 = vmatprep.subr.bf16.mxu0 0
    %764 = vmatpush2.bf16.msra.mxu0 0
    %765 = vmatprep.subr.bf16.mxu0 0
    %766 = vmatpush2.bf16.msra.mxu0 0
    %767 = vmatprep.subr.bf16.mxu0 0
    %768 = vmatpush2.bf16.msra.mxu0 0
    %769 = vmatprep.subr.bf16.mxu0 0
    %770 = vmatpush2.bf16.msra.mxu0 0
    %771 = vmatprep.mubr.bf16.mxu0 0
    %772 = vmatmul.mubr.bf16.gmra.mxu0 %v487
    %v773 = vpop.f32.mrf.mxu0
    %v774 = vadd.f32 %v725, %v773
    %v775 = vpop.f32.mrf.mxu0
    %v776 = vpop.f32.mrf.mxu0
    %v777 = vadd.f32 %v728, %v776
    %v778 = vpop.f32.mrf.mxu0
    %779 = vmatprep.mubr.bf16.mxu0 0
    %780 = vmatmul.mubr.bf16.gmra.mxu0 %v490
    %v781 = vpop.f32.mrf.mxu0
    %v782 = vadd.f32 %v733, %v781
    %v783 = vpop.f32.mrf.mxu0
    %v784 = vpop.f32.mrf.mxu0
    %v785 = vadd.f32 %v736, %v784
    %v786 = vpop.f32.mrf.mxu0
    %787 = vdwg.mxu0
    %v788 = vadd.f32 %v774, %v63
    %v789 = vadd.f32 %v777, %v64
    %v790 = vadd.f32 %v782, %v65
    %v791 = vadd.f32 %v785, %v66
    %v792 = vmax.f32 %v788, 0.0
    %v793 = vmax.f32 %v789, 0.0
    %v794 = vmax.f32 %v790, 0.0
    %v795 = vmax.f32 %v791, 0.0
    %796 = vst [vmem:[#allocation8] sm:$0xff] %v792
    %797 = vst [vmem:[#allocation8 + $0x8] sm:$0xff] %v793
    %798 = vst [vmem:[#allocation8 + $0x10] sm:$0xff] %v794
    %799 = vst [vmem:[#allocation8 + $0x18] sm:$0xff] %v795
    // Predicated region
    $region34: #{basic_block_forward_rows.1} parent=1 // pred_check
      _
    $region35: #{basic_block_forward_rows.1} parent=1 // pred_check_branch
      %801 = sbr.rel (0) target = $region37
    $region36: #{basic_block_forward_rows.1} parent=1 // pred_region
      %s803 = ssub.s32 512, 512
      %804 = vsyncadd [#allocation4], %s803
      %s805 = sshll.u32 [#allocation8], 4
      %s806 = int_to_ptr.vmem [resolvable:$true] %s805
      %811 = dma.vmem_to_hbm [thread:$0]  %s806, 512, %s5, [#allocation4], 128, 128, 8
    $region37: #{basic_block_forward_rows.1} parent=1 // pred_fallthru
      _
    // Predicated region
    $region38: #{basic_block_forward_rows.1} parent=1 // pred_check
      _
    $region39: #{basic_block_forward_rows.1} parent=1 // pred_check_branch
      %813 = sbr.rel (0) target = $region41
    $region40: #{basic_block_forward_rows.1} parent=1 // pred_region
      %814 = dma.done [#allocation4], 512
    $region41: #{basic_block_forward_rows.1} parent=1 // pred_fallthru
      _
    %815 = vsyncpa [#allocation3], 1
    %816 = vsyncpa [#allocation6], 1
    %817 = vsyncpa [#allocation4], 1

</llo_original>
